<compile_context>
chip_gen: v7x
topology: tpu7x:2x2x1
jax: 0.10.0
libtpu: 0.0.40
codegen_flags: <defaults>
</compile_context>

<pallas_src>
import jax
import jax.numpy as jnp
from jax.experimental import pallas as pl
from jax.experimental.pallas import tpu as pltpu

# Deterministic "module parameters": the loss weights.
W_MSE = 0.7
W_MAE = 0.3

LANES = 128
SUBLANES = 8
MAX_BLOCK_ROWS = 2048   # (2048, 128) f32 block = 1 MiB per input per buffer
NUM_CORES = 2           # leading "parallel" grid axis (megacore on v7x)


def _round_up(x, m):
    return (x + m - 1) // m * m


def _weighted_loss_kernel(t_ref, p_ref, o_ref):
    i = pl.program_id(1)  # reduction axis (inner, "arbitrary")

    @pl.when(i == 0)
    def _init():
        o_ref[...] = jnp.zeros_like(o_ref)

    d = t_ref[...].astype(jnp.float32) - p_ref[...].astype(jnp.float32)
    block_rows = d.shape[0]
    # (block_rows, 128) -> (block_rows//8, 8, 128); sum over the leading axis
    # is pure vreg-wise VPU accumulation (no cross-lane XLU work per step).
    d3 = d.reshape(block_rows // SUBLANES, SUBLANES, LANES)
    o_ref[0, :, :] += jnp.sum(d3 * d3, axis=0)        # squared-error partials
    o_ref[1, :, :] += jnp.sum(jnp.abs(d3), axis=0)    # absolute-error partials


def weighted_loss(target, pred):
    """0.7 * MSELoss(target, pred) + 0.3 * L1Loss(target, pred), mean-reduced.

    Accepts any identically-shaped float arrays (e.g. NCHW), any size, any
    float dtype (bf16 is read as-is and upcast inside the kernel).
    """
    assert target.shape == pred.shape
    n_elems = int(target.size)

    rows = max(1, _round_up(n_elems, LANES) // LANES)
    block_rows = min(MAX_BLOCK_ROWS, _round_up(rows, SUBLANES))
    blocks_per_core = max(1, _round_up(rows, NUM_CORES * block_rows)
                          // (NUM_CORES * block_rows))
    padded_rows = NUM_CORES * blocks_per_core * block_rows
    padded_n = padded_rows * LANES

    def to_slab(x):
        flat = x.reshape(-1)
        if padded_n > n_elems:
            # zero padding: diff = 0 contributes nothing to either sum.
            flat = jnp.pad(flat, (0, padded_n - n_elems))
        return flat.reshape(padded_rows, LANES)

    t2d = to_slab(target)
    p2d = to_slab(pred)

    in_map = lambda c, i: (c * blocks_per_core + i, 0)

    partials = pl.pallas_call(
        _weighted_loss_kernel,
        out_shape=jax.ShapeDtypeStruct(
            (2, NUM_CORES * SUBLANES, LANES), jnp.float32),
        grid_spec=pltpu.PrefetchScalarGridSpec(
            num_scalar_prefetch=0,
            grid=(NUM_CORES, blocks_per_core),
            in_specs=[
                pl.BlockSpec((block_rows, LANES), in_map),
                pl.BlockSpec((block_rows, LANES), in_map),
            ],
            # Per-core lane-dense accumulator block, resident across the
            # inner reduction axis (index map ignores i).
            out_specs=pl.BlockSpec((2, SUBLANES, LANES),
                                   lambda c, i: (0, c, 0)),
        ),
        compiler_params=pltpu.CompilerParams(
            dimension_semantics=("parallel", "arbitrary"),
        ),
    )(t2d, p2d)

    # Tiny final combine in plain JAX: cross-lane/core reduce, weight, divide
    # by the TRUE element count (padding already contributed zero).
    sse = jnp.sum(partials[0])
    sae = jnp.sum(partials[1])
    return (W_MSE * sse + W_MAE * sae) / n_elems


if __name__ == "__main__":
    key = jax.random.PRNGKey(0)
    k1, k2 = jax.random.split(key)
    # NCHW: batch=2, channels=4, spatial=16x16
    target = jax.random.normal(k1, (2, 4, 16, 16), dtype=jnp.float32)
    pred = jax.random.normal(k2, (2, 4, 16, 16), dtype=jnp.float32)

    loss = weighted_loss(target, pred)
    loss = jax.block_until_ready(loss)

    # Reference check (plain JAX)
    d = target - pred
    ref = W_MSE * jnp.mean(d * d) + W_MAE * jnp.mean(jnp.abs(d))
    assert jnp.allclose(loss, ref, rtol=1e-5, atol=1e-5), (loss, ref)

    print("KERNEL_OK")
</pallas_src>

<mosaic_0001>
module attributes {stable_mosaic.version = 11 : i64} {
  func.func @_weighted_loss_kernel(%arg0: i32, %arg1: i32, %arg2: memref<16x128xf32, #tpu.memory_space<vmem>>, %arg3: memref<16x128xf32, #tpu.memory_space<vmem>>, %arg4: memref<2x8x128xf32, #tpu.memory_space<vmem>>) attributes {dimension_semantics = [#tpu.dimension_semantics<parallel>, #tpu.dimension_semantics<arbitrary>], iteration_bounds = array<i64: 2, 1>, scalar_prefetch = 0 : i64, scratch_operands = 0 : i64, tpu.core_type = #tpu.core_type<tc>, window_params = [{transform_indices = @transform_0, window_bounds = array<i64: 16, 128>}, {transform_indices = @transform_1, window_bounds = array<i64: 16, 128>}, {transform_indices = @transform_2, window_bounds = array<i64: 2, 8, 128>}]} {
    %c0_i32 = arith.constant 0 : i32
    %0 = arith.cmpi eq, %arg1, %c0_i32 : i32
    %1 = arith.extui %0 : i1 to i32
    %c0_i32_0 = arith.constant 0 : i32
    %2 = arith.cmpi ne, %1, %c0_i32_0 : i32
    scf.if %2 {
      %cst_16 = arith.constant 0.000000e+00 : f32
      %23 = vector.broadcast %cst_16 : f32 to vector<2x8x128xf32>
      %c0_17 = arith.constant 0 : index
      %c0_18 = arith.constant 0 : index
      %c0_19 = arith.constant 0 : index
      %24 = vector.load %arg4[%c0_17, %c0_18, %c0_19] : memref<2x8x128xf32, #tpu.memory_space<vmem>>, vector<2x8x128xf32>
      tpu.vector_store %arg4[%c0_17, %c0_18, %c0_19], %23 {strides = array<i32>} : memref<2x8x128xf32, #tpu.memory_space<vmem>>, vector<2x8x128xf32>,
    } else {
    }
    %c0 = arith.constant 0 : index
    %c0_1 = arith.constant 0 : index
    %3 = vector.load %arg2[%c0, %c0_1] : memref<16x128xf32, #tpu.memory_space<vmem>>, vector<16x128xf32>
    %c0_2 = arith.constant 0 : index
    %c0_3 = arith.constant 0 : index
    %4 = vector.load %arg3[%c0_2, %c0_3] : memref<16x128xf32, #tpu.memory_space<vmem>>, vector<16x128xf32>
    %5 = arith.subf %3, %4 : vector<16x128xf32>
    %6 = vector.shape_cast %5 : vector<16x128xf32> to vector<2x8x128xf32>
    %c0_4 = arith.constant 0 : index
    %c0_5 = arith.constant 0 : index
    %c0_6 = arith.constant 0 : index
    %7 = vector.load %arg4[%c0_4, %c0_5, %c0_6] : memref<2x8x128xf32, #tpu.memory_space<vmem>>, vector<1x8x128xf32>
    %8 = vector.shape_cast %7 : vector<1x8x128xf32> to vector<8x128xf32>
    %9 = arith.mulf %6, %6 : vector<2x8x128xf32>
    %cst = arith.constant dense<0.000000e+00> : vector<8x128xf32>
    %10 = vector.multi_reduction <add>, %9, %cst [0] : vector<2x8x128xf32> to vector<8x128xf32>
    %11 = arith.addf %8, %10 : vector<8x128xf32>
    %c0_7 = arith.constant 0 : index
    %c0_8 = arith.constant 0 : index
    %c0_9 = arith.constant 0 : index
    %12 = vector.load %arg4[%c0_7, %c0_8, %c0_9] : memref<2x8x128xf32, #tpu.memory_space<vmem>>, vector<1x8x128xf32>
    %13 = vector.shape_cast %12 : vector<1x8x128xf32> to vector<8x128xf32>
    %14 = vector.shape_cast %11 : vector<8x128xf32> to vector<1x8x128xf32>
    tpu.vector_store %arg4[%c0_7, %c0_8, %c0_9], %14 {strides = array<i32>} : memref<2x8x128xf32, #tpu.memory_space<vmem>>, vector<1x8x128xf32>,
    %c1 = arith.constant 1 : index
    %c0_10 = arith.constant 0 : index
    %c0_11 = arith.constant 0 : index
    %15 = vector.load %arg4[%c1, %c0_10, %c0_11] : memref<2x8x128xf32, #tpu.memory_space<vmem>>, vector<1x8x128xf32>
    %16 = vector.shape_cast %15 : vector<1x8x128xf32> to vector<8x128xf32>
    %17 = math.absf %6 : vector<2x8x128xf32>
    %cst_12 = arith.constant dense<0.000000e+00> : vector<8x128xf32>
    %18 = vector.multi_reduction <add>, %17, %cst_12 [0] : vector<2x8x128xf32> to vector<8x128xf32>
    %19 = arith.addf %16, %18 : vector<8x128xf32>
    %c1_13 = arith.constant 1 : index
    %c0_14 = arith.constant 0 : index
    %c0_15 = arith.constant 0 : index
    %20 = vector.load %arg4[%c1_13, %c0_14, %c0_15] : memref<2x8x128xf32, #tpu.memory_space<vmem>>, vector<1x8x128xf32>
    %21 = vector.shape_cast %20 : vector<1x8x128xf32> to vector<8x128xf32>
    %22 = vector.shape_cast %19 : vector<8x128xf32> to vector<1x8x128xf32>
    tpu.vector_store %arg4[%c1_13, %c0_14, %c0_15], %22 {strides = array<i32>} : memref<2x8x128xf32, #tpu.memory_space<vmem>>, vector<1x8x128xf32>,
    return
  }
  func.func @transform_0(%arg0: i32, %arg1: i32) -> (i32, i32) {
    %c1_i32 = arith.constant 1 : i32
    %0 = arith.muli %arg0, %c1_i32 : i32
    %1 = arith.addi %0, %arg1 : i32
    %c0_i32 = arith.constant 0 : i32
    %c0_i32_0 = arith.constant 0 : i32
    return %1, %c0_i32 : i32, i32
  }
  func.func @transform_1(%arg0: i32, %arg1: i32) -> (i32, i32) {
    %c1_i32 = arith.constant 1 : i32
    %0 = arith.muli %arg0, %c1_i32 : i32
    %1 = arith.addi %0, %arg1 : i32
    %c0_i32 = arith.constant 0 : i32
    %c0_i32_0 = arith.constant 0 : i32
    return %1, %c0_i32 : i32, i32
  }
  func.func @transform_2(%arg0: i32, %arg1: i32) -> (i32, i32, i32) {
    %c0_i32 = arith.constant 0 : i32
    %c0_i32_0 = arith.constant 0 : i32
    %c0_i32_1 = arith.constant 0 : i32
    return %c0_i32, %arg0, %c0_i32_0 : i32, i32, i32
  }
}

</mosaic_0001>

<llo_original>
// kernel: tpu_custom_call.1
$region0: #{tpu_custom_call.1}
  #allocation0 [shape = 'u32[]', space=smem, size = 0x4, offset = 0x4, fixed_abs, tag = 'smem constant byte address 0x4 - core index']
  #allocation1 [shape = 'u32[144,128]{1,0:T(1,128)}', space=vmem, size = 0x12000, scoped, tag = 'internal scratch']
  %s0 = inlined_call_operand.hbm [shape: f32[32,128], index: 0, kind: input, shape index: {}]
  %s1 = inlined_call_operand.hbm [shape: f32[32,128], index: 1, kind: input, shape index: {}]
  %s2 = inlined_call_operand.hbm [shape: f32[2,16,128], index: 2, kind: output, shape index: {}]
  %s3 = sld [smem:[#allocation0]]
  $region53: #{tpu_custom_call.1} parent=0
    _
  %s5 = ssub.s32 1, %s3
  %s6 = scalar_select 0, %s5, %s3
  $region1: #{tpu_custom_call.1} parent=0
    #allocation2 [shape = 'u8[16384]{0}', space=vmem, size = 0x4000, scoped, tag = 'input window, operand 0']
    #allocation3 [shape = 's32[2]{0}', space=sflag, size = 0x8, scoped, tag = 'scoped memory for tpu_custom_call.1']
    #allocation4 [shape = 's32[2]{0}', space=sflag, size = 0x8, scoped, tag = 'scoped memory for tpu_custom_call.1']
    #allocation5 [shape = 'u8[16384]{0}', space=vmem, size = 0x4000, scoped, tag = 'input window, operand 1']
    #allocation6 [shape = 's32[2]{0}', space=sflag, size = 0x8, scoped, tag = 'scoped memory for tpu_custom_call.1']
    #allocation7 [shape = 'u8[16384]{0}', space=vmem, size = 0x4000, scoped, tag = 'output window, operand 0']
    %7 = vsyncpa [#allocation3], 0
    %s8 = scalar_lea.sflag [#allocation3], 1
    %9 = vsyncpa %s8, 0
    %10 = vsyncpa [#allocation6], 0
    %s11 = scalar_lea.sflag [#allocation6], 1
    %12 = vsyncpa %s11, 0
    %13 = vsyncpa [#allocation4], 0
    %s14 = scalar_lea.sflag [#allocation4], 1
    %15 = vsyncpa %s14, 0
    loop: start=0, step=1, limit=4
    $region2: #{tpu_custom_call.1} parent=1 // loop_pre_header
      _
    $region3: #{tpu_custom_call.1} parent=1 // loop_header
      %s17 = sphi 0, %s21
      %p18 = scmp.ge.s32.totalorder %s17, 4
      %s24 = sphi 0, %s36
      %s25 = sphi 0, %s32
      %s26 = sphi 0, %s24
      %s27 = sphi 0, %s25
      %s28 = sphi 0, %s26
      %s29 = sphi 0, %s27
      %s41 = sphi 0, %s43
      %s44 = sphi 0, %s41
      %s45 = sphi 0, %s44
      %s61 = sphi 0, %s45
      %s69 = sphi 0, %s71
      %s72 = sphi 0, %s69
      %s73 = sphi 0, %s72
      %s89 = sphi 0, %s73
      %s95 = sphi 0, %s97
      %s98 = sphi 0, %s95
      %s99 = sphi 0, %s98
      %s115 = sphi 0, %s99
    $region4: #{tpu_custom_call.1} parent=1 // loop_header_branch
      %20 = sbr.rel (%p18) target = $region8
    $region5: #{tpu_custom_call.1} parent=1 // loop_body
      %s22 = ssub.s32 %s17, 1
      %s23 = ssub.s32 %s17, 2
      %s30 = sadd.s32 1, %s25
      %p31 = scmp.ge.s32.totalorder %s30, 1
      %s32 = scalar_select %p31, 0, %s30
      %s33 = sadd.s32 1, %s24
      %s34 = scalar_select %p31, %s33, %s24
      %p35 = scmp.ge.s32.totalorder %s34, 2
      %s36 = scalar_select %p35, 0, %s34
      %s37 = sadd.s32 %s24, %s25
      %s38 = sadd.s32 %s36, %s32
      %s39 = ssub.s32 %s37, %s38
      %p40 = scmp.eq.s32.totalorder %s39, 0
      %s42 = sadd.s32 %s41, 1
      %s43 = scalar_select %p40, %s41, %s42
      %p46 = pneg %p40
      %p47 = scmp.eq.s32.totalorder %s17, 1
      %p48 = por %p46, %p47
      %p49 = scmp.ne.s32.totalorder %s41, %s44
      %p50 = scmp.eq.s32.totalorder %s17, 0
      %p51 = por %p49, %p50
      %p52 = scmp.ne.s32.totalorder %s41, %s44
      %p53 = scmp.eq.s32.totalorder %s22, 1
      %p54 = por %p52, %p53
      %p55 = scmp.ne.s32.totalorder %s44, %s45
      %p56 = scmp.eq.s32.totalorder %s22, 0
      %p57 = por %p55, %p56
      %p58 = scmp.ne.s32.totalorder %s44, %s45
      %p59 = scmp.eq.s32.totalorder %s23, 1
      %p60 = por %p58, %p59
      %p62 = scmp.ne.s32.totalorder %s45, %s61
      %p63 = scmp.eq.s32.totalorder %s23, 0
      %p64 = por %p62, %p63
      %s65 = sadd.s32 %s24, %s25
      %s66 = sadd.s32 %s36, %s32
      %s67 = ssub.s32 %s65, %s66
      %p68 = scmp.eq.s32.totalorder %s67, 0
      %s70 = sadd.s32 %s69, 1
      %s71 = scalar_select %p68, %s69, %s70
      %p74 = pneg %p68
      %p75 = scmp.eq.s32.totalorder %s17, 1
      %p76 = por %p74, %p75
      %p77 = scmp.ne.s32.totalorder %s69, %s72
      %p78 = scmp.eq.s32.totalorder %s17, 0
      %p79 = por %p77, %p78
      %p80 = scmp.ne.s32.totalorder %s69, %s72
      %p81 = scmp.eq.s32.totalorder %s22, 1
      %p82 = por %p80, %p81
      %p83 = scmp.ne.s32.totalorder %s72, %s73
      %p84 = scmp.eq.s32.totalorder %s22, 0
      %p85 = por %p83, %p84
      %p86 = scmp.ne.s32.totalorder %s72, %s73
      %p87 = scmp.eq.s32.totalorder %s23, 1
      %p88 = por %p86, %p87
      %p90 = scmp.ne.s32.totalorder %s73, %s89
      %p91 = scmp.eq.s32.totalorder %s23, 0
      %p92 = por %p90, %p91
      %s93 = ssub.s32 %s24, %s36
      %p94 = scmp.eq.s32.totalorder %s93, 0
      %s96 = sadd.s32 %s95, 1
      %s97 = scalar_select %p94, %s95, %s96
      %p100 = pneg %p94
      %p101 = scmp.eq.s32.totalorder %s17, 1
      %p102 = por %p100, %p101
      %p103 = scmp.ne.s32.totalorder %s95, %s98
      %p104 = scmp.eq.s32.totalorder %s17, 0
      %p105 = por %p103, %p104
      %p106 = scmp.ne.s32.totalorder %s95, %s98
      %p107 = scmp.eq.s32.totalorder %s22, 1
      %p108 = por %p106, %p107
      %p109 = scmp.ne.s32.totalorder %s98, %s99
      %p110 = scmp.eq.s32.totalorder %s22, 0
      %p111 = por %p109, %p110
      %p112 = scmp.ne.s32.totalorder %s98, %s99
      %p113 = scmp.eq.s32.totalorder %s23, 1
      %p114 = por %p112, %p113
      %p116 = scmp.ne.s32.totalorder %s99, %s115
      %p117 = scmp.eq.s32.totalorder %s23, 0
      %p118 = por %p116, %p117
      %p119 = scmp.le.s32.totalorder 1, %s17
      %p120 = scmp.lt.s32.totalorder %s17, 3
      %p121 = pnand %p119, %p120
      %p122 = pneg %p121
      // Predicated region
      $region9: #{tpu_custom_call.1} parent=5 // pred_check
        _
      $region10: #{tpu_custom_call.1} parent=5 // pred_check_branch
        %124 = sbr.rel (%p121) target = $region12
      $region11: #{tpu_custom_call.1} parent=5 // pred_region
        %s125 = ssub.s32 %s17, 1
      $region12: #{tpu_custom_call.1} parent=5 // pred_fallthru
        _
      %p126 = scmp.lt.s32.totalorder %s17, 2
      // Predicated region
      $region13: #{tpu_custom_call.1} parent=5 // pred_check
        %p127 = pneg %p126
      $region14: #{tpu_custom_call.1} parent=5 // pred_check_branch
        %129 = sbr.rel (%p127) target = $region16
      $region15: #{tpu_custom_call.1} parent=5 // pred_region
        // Predicated region
        $region17: #{tpu_custom_call.1} parent=15 // pred_check
          %p130 = pneg %p51
        $region18: #{tpu_custom_call.1} parent=15 // pred_check_branch
          %132 = sbr.rel (%p130) target = $region20
        $region19: #{tpu_custom_call.1} parent=15 // pred_region
          %s133 = sand.u32 %s41, 1
          %s134 = scalar_lea.sflag [#allocation3], %s133
          %s135 = sand.u32 %s41, 1
          %s136 = smul.addr %s135, 16
          %s137 = scalar_lea.vmem [#allocation2], %s136
          %s138 = sadd.s32 %s24, %s25
          %s139 = smul.u32 2, %s138
          %s141 = ssub.s32 256, 256
          %142 = vsyncadd %s134, %s141
          %s143 = smul.addr %s139, 128
          %s144 = scalar_lea.hbm %s0, %s143
          %s145 = sshll.u32 %s137, 4
          %s146 = int_to_ptr.vmem [resolvable:$true] %s145
          %151 = dma.hbm_to_vmem [thread:$0]  %s144, 256, %s146, %s134, 128, 128, 8
        $region20: #{tpu_custom_call.1} parent=15 // pred_fallthru
          _
        // Predicated region
        $region21: #{tpu_custom_call.1} parent=15 // pred_check
          %p152 = pneg %p79
        $region22: #{tpu_custom_call.1} parent=15 // pred_check_branch
          %154 = sbr.rel (%p152) target = $region24
        $region23: #{tpu_custom_call.1} parent=15 // pred_region
          %s155 = sand.u32 %s69, 1
          %s156 = scalar_lea.sflag [#allocation6], %s155
          %s157 = sand.u32 %s69, 1
          %s158 = smul.addr %s157, 16
          %s159 = scalar_lea.vmem [#allocation5], %s158
          %s160 = sadd.s32 %s24, %s25
          %s161 = smul.u32 2, %s160
          %s163 = ssub.s32 256, 256
          %164 = vsyncadd %s156, %s163
          %s165 = smul.addr %s161, 128
          %s166 = scalar_lea.hbm %s1, %s165
          %s167 = sshll.u32 %s159, 4
          %s168 = int_to_ptr.vmem [resolvable:$true] %s167
          %173 = dma.hbm_to_vmem [thread:$0]  %s166, 256, %s168, %s156, 128, 128, 8
        $region24: #{tpu_custom_call.1} parent=15 // pred_fallthru
          _
      $region16: #{tpu_custom_call.1} parent=5 // pred_fallthru
        _
      %p174 = scmp.le.s32.totalorder 1, %s17
      %p175 = scmp.lt.s32.totalorder %s17, 3
      %p176 = pnand %p174, %p175
      %p177 = pneg %p176
      // Predicated region
      $region25: #{tpu_custom_call.1} parent=5 // pred_check
        _
      $region26: #{tpu_custom_call.1} parent=5 // pred_check_branch
        %179 = sbr.rel (%p176) target = $region28
      $region27: #{tpu_custom_call.1} parent=5 // pred_region
        %s180 = ssub.s32 %s17, 1
        %s181 = sand.u32 %s44, 1
        %s182 = scalar_lea.sflag [#allocation3], %s181
        %s183 = sand.u32 %s44, 1
        %s184 = smul.addr %s183, 16
        %s185 = scalar_lea.vmem [#allocation2], %s184
        // Predicated region
        $region29: #{tpu_custom_call.1} parent=27 // pred_check
          %p186 = pneg %p57
        $region30: #{tpu_custom_call.1} parent=27 // pred_check_branch
          %188 = sbr.rel (%p186) target = $region32
        $region31: #{tpu_custom_call.1} parent=27 // pred_region
          %189 = dma.done %s182, 256
        $region32: #{tpu_custom_call.1} parent=27 // pred_fallthru
          _
        %s190 = sand.u32 %s72, 1
        %s191 = scalar_lea.sflag [#allocation6], %s190
        %s192 = sand.u32 %s72, 1
        %s193 = smul.addr %s192, 16
        %s194 = scalar_lea.vmem [#allocation5], %s193
        // Predicated region
        $region33: #{tpu_custom_call.1} parent=27 // pred_check
          %p195 = pneg %p85
        $region34: #{tpu_custom_call.1} parent=27 // pred_check_branch
          %197 = sbr.rel (%p195) target = $region36
        $region35: #{tpu_custom_call.1} parent=27 // pred_region
          %198 = dma.done %s191, 256
        $region36: #{tpu_custom_call.1} parent=27 // pred_fallthru
          _
        %s199 = sand.u32 %s44, 1
        %s200 = scalar_lea.sflag [#allocation3], %s199
        %s201 = sand.u32 %s44, 1
        %s202 = smul.addr %s201, 16
        %s203 = scalar_lea.vmem [#allocation2], %s202
        %p204 = pneg %p57
        %p205 = pneg %p54
        %s206 = sand.u32 %s72, 1
        %s207 = scalar_lea.sflag [#allocation6], %s206
        %s208 = sand.u32 %s72, 1
        %s209 = smul.addr %s208, 16
        %s210 = scalar_lea.vmem [#allocation5], %s209
        %p211 = pneg %p85
        %p212 = pneg %p82
        %p213 = pneg %p111
        %p214 = pneg %p108
        %s215 = sand.u32 %s98, 1
        %s216 = scalar_lea.sflag [#allocation4], %s215
        %s217 = sand.u32 %s98, 1
        %s218 = smul.addr %s217, 16
        %s219 = scalar_lea.vmem [#allocation7], %s218
        %s220 = sadd.s32 %s26, %s27
        %s221 = smul.u32 2, %s220
        %s222 = sadd.s32 %s26, %s27
        %s223 = smul.u32 2, %s222
        %p224 = scmp.eq.s32.totalorder %s27, 0
        // Predicated region
        $region37: #{tpu_custom_call.1} parent=27 // pred_check
          %p225 = pneg %p224
        $region38: #{tpu_custom_call.1} parent=27 // pred_check_branch
          %227 = sbr.rel (%p225) target = $region40
        $region39: #{tpu_custom_call.1} parent=27 // pred_region
          %228 = vst [vmem:[%s219] sm:$0xff] 0.0
          %229 = vst [vmem:[%s219 + $0x8] sm:$0xff] 0.0
        $region40: #{tpu_custom_call.1} parent=27 // pred_fallthru
          _
        %v230 = vld [vmem:[%s185] sm:$0xff]
        %v231 = vld [vmem:[%s185 + $0x8] sm:$0xff]
        %v232 = vld [vmem:[%s194] sm:$0xff]
        %v233 = vld [vmem:[%s194 + $0x8] sm:$0xff]
        %v234 = vsub.f32 %v230, %v232
        %v235 = vsub.f32 %v231, %v233
        %v236 = vld [vmem:[%s219] sm:$0xff]
        %v237 = vmul.f32 %v234, %v234
        %v238 = vmul.f32 %v235, %v235
        %v239 = vadd.f32 %v237, %v238
        %v240 = vadd.f32 %v236, %v239
        %241 = vst [vmem:[%s219] sm:$0xff] %v240
        %s242 = scalar_lea.vmem %s219, 8 [#allocation7]
        %v243 = vld [vmem:[%s242] sm:$0xff]
        %v244 = vand.u32 2147483647, %v234
        %v245 = vand.u32 2147483647, %v235
        %v246 = vadd.f32 %v244, %v245
        %v247 = vadd.f32 %v243, %v246
        %248 = vst [vmem:[%s242] sm:$0xff] %v247
        %s249 = sand.u32 %s98, 1
        %s250 = scalar_lea.sflag [#allocation4], %s249
        %s251 = sand.u32 %s98, 1
        %s252 = smul.addr %s251, 16
        %s253 = scalar_lea.vmem [#allocation7], %s252
        // Predicated region
        $region41: #{tpu_custom_call.1} parent=27 // pred_check
          %p254 = pneg %p108
        $region42: #{tpu_custom_call.1} parent=27 // pred_check_branch
          %256 = sbr.rel (%p254) target = $region44
        $region43: #{tpu_custom_call.1} parent=27 // pred_region
          %s258 = ssub.s32 256, 256
          %259 = vsyncadd %s250, %s258
          %s260 = smul.addr %s26, 128
          %s261 = scalar_lea.hbm %s2, %s260
          %s262 = sshll.u32 %s253, 4
          %s263 = int_to_ptr.vmem [resolvable:$true] %s262
          %268 = dma.vmem_to_hbm [thread:$0]  %s263, 256, %s261, %s250, 128, 256, 8
        $region44: #{tpu_custom_call.1} parent=27 // pred_fallthru
          _
      $region28: #{tpu_custom_call.1} parent=5 // pred_fallthru
        _
      %p269 = scmp.le.s32.totalorder 2, %s17
      // Predicated region
      $region45: #{tpu_custom_call.1} parent=5 // pred_check
        %p270 = pneg %p269
      $region46: #{tpu_custom_call.1} parent=5 // pred_check_branch
        %272 = sbr.rel (%p270) target = $region48
      $region47: #{tpu_custom_call.1} parent=5 // pred_region
        %s273 = ssub.s32 %s17, 2
        // Predicated region
        $region49: #{tpu_custom_call.1} parent=47 // pred_check
          %p274 = pneg %p114
        $region50: #{tpu_custom_call.1} parent=47 // pred_check_branch
          %276 = sbr.rel (%p274) target = $region52
        $region51: #{tpu_custom_call.1} parent=47 // pred_region
          %s277 = sand.u32 %s99, 1
          %s278 = scalar_lea.sflag [#allocation4], %s277
          %s279 = sand.u32 %s99, 1
          %s280 = smul.addr %s279, 16
          %s281 = scalar_lea.vmem [#allocation7], %s280
          %282 = dma.done %s278, 256
        $region52: #{tpu_custom_call.1} parent=47 // pred_fallthru
          _
      $region48: #{tpu_custom_call.1} parent=5 // pred_fallthru
        _
    $region6: #{tpu_custom_call.1} parent=1 // loop_footer
      %s21 = sadd.s32 1, %s17
    $region7: #{tpu_custom_call.1} parent=1 // loop_footer_branch
      %16 = sbr.rel target = $region3
    $region8: #{tpu_custom_call.1} parent=1 // loop_exit
      _
    %283 = vsyncpa [#allocation3], 1
    %s284 = scalar_lea.sflag [#allocation3], 1
    %285 = vsyncpa %s284, 1
    %286 = vsyncpa [#allocation6], 1
    %s287 = scalar_lea.sflag [#allocation6], 1
    %288 = vsyncpa %s287, 1
    %289 = vsyncpa [#allocation4], 1
    %s290 = scalar_lea.sflag [#allocation4], 1
    %291 = vsyncpa %s290, 1

</llo_original>
